<compile_context>
chip_gen: v7x
topology: tpu7x:2x2x1
jax: 0.10.0
libtpu: 0.0.40
codegen_flags: <defaults>
</compile_context>

<pallas_src>
from functools import partial

import jax
import jax.numpy as jnp
from jax.experimental import pallas as pl
from jax.experimental.pallas import tpu as pltpu


def _fused_matmul_kernel(p_ref, w_ref, o_ref):
    # p_ref: (TM, C*K) patch row-tile
    # w_ref: (C*K, Dp) fused conv+dense weight (resident in VMEM)
    # o_ref: (TM, Dp)  lane-dense output tile
    o_ref[...] = jnp.dot(
        p_ref[...], w_ref[...], preferred_element_type=jnp.float32
    ).astype(o_ref.dtype)


def _round_up(x, m):
    return ((x + m - 1) // m) * m


def location_layer(attention_weights_cat, w_conv, w_dense, *, row_tile=256):
    """LocationLayer forward.

    attention_weights_cat: (B, 2, T)   (NCW, same layout as PyTorch Conv1d input)
    w_conv:  (F, 2, K)  conv weight (K odd)
    w_dense: (D, F)     dense weight
    returns: (B, T, D)  (same as the PyTorch module output)
    """
    B, C, T = attention_weights_cat.shape
    F_, Cw, K = w_conv.shape
    assert Cw == C and K % 2 == 1, "expects in_channels=2 and odd kernel size"
    D = w_dense.shape[0]
    pad = (K - 1) // 2
    dtype = attention_weights_cat.dtype

    # ---- wrapper-side glue (cheap XLA ops on tiny tensors) ----------------
    # Fused weight: W_fused[c*K + k, d] = sum_f w_conv[f, c, k] * w_dense[d, f]
    wconv_t = w_conv.reshape(F_, C * K).T                 # (C*K, F)
    w_fused = jnp.dot(wconv_t, w_dense.T,
                      preferred_element_type=jnp.float32)  # (C*K, D)

    # im2col: patches[b, t, c*K + k] = x_padded[b, c, t + k]
    xp = jnp.pad(attention_weights_cat, ((0, 0), (0, 0), (pad, pad)))
    cols = [xp[:, c, k:k + T] for c in range(C) for k in range(K)]  # each (B, T)
    patches = jnp.stack(cols, axis=-1).reshape(B * T, C * K)        # (B*T, C*K)

    CK = C * K
    M = B * T
    TM = min(row_tile, _round_up(M, 8))      # row tile (multiple of 8 sublanes)
    Mp = _round_up(M, TM)                    # padded row count
    Dp = _round_up(D, 128)                   # lane-dense output width

    patches_p = jnp.pad(patches, ((0, Mp - M), (0, 0))).astype(dtype)
    w_fused_p = jnp.pad(w_fused, ((0, 0), (0, Dp - D))).astype(dtype)

    # ---- single fused matmul kernel, gridded over row-tiles ---------------
    out_p = pl.pallas_call(
        _fused_matmul_kernel,
        out_shape=jax.ShapeDtypeStruct((Mp, Dp), dtype),
        grid_spec=pltpu.PrefetchScalarGridSpec(
            num_scalar_prefetch=0,
            grid=(Mp // TM,),
            in_specs=[
                pl.BlockSpec((TM, CK), lambda i: (i, 0)),   # patch row-tile
                pl.BlockSpec((CK, Dp), lambda i: (0, 0)),   # weight, VMEM-resident
            ],
            out_specs=pl.BlockSpec((TM, Dp), lambda i: (i, 0)),
        ),
        compiler_params=pltpu.CompilerParams(
            dimension_semantics=("parallel",)),
    )(patches_p, w_fused_p)

    return out_p[:M, :D].reshape(B, T, D)


def location_layer_ref(attention_weights_cat, w_conv, w_dense):
    """Pure-JAX reference matching the PyTorch forward."""
    K = w_conv.shape[-1]
    pad = (K - 1) // 2
    conv = jax.lax.conv_general_dilated(
        attention_weights_cat, w_conv,
        window_strides=(1,), padding=[(pad, pad)],
        dimension_numbers=("NCH", "OIH", "NCH"))          # (B, F, T)
    return jnp.einsum("bft,df->btd", conv, w_dense)        # transpose(1,2) + Linear


if __name__ == "__main__":
    # Small shapes consistent with the module: B=2, in_channels=2, T=16,
    # attention_n_filters=8, attention_kernel_size=5, attention_dim=16.
    B, C, T = 2, 2, 16
    n_filters, kernel_size, attention_dim = 8, 5, 16

    key = jax.random.PRNGKey(0)
    kx, kc, kd = jax.random.split(key, 3)
    attention_weights_cat = jax.random.normal(kx, (B, C, T), dtype=jnp.float32)
    w_conv = 0.1 * jax.random.normal(kc, (n_filters, C, kernel_size), dtype=jnp.float32)
    w_dense = 0.1 * jax.random.normal(kd, (attention_dim, n_filters), dtype=jnp.float32)

    out = location_layer(attention_weights_cat, w_conv, w_dense)
    out = jax.block_until_ready(out)

    ref = location_layer_ref(attention_weights_cat, w_conv, w_dense)
    assert out.shape == (B, T, attention_dim)
    assert jnp.allclose(out, ref, atol=1e-4, rtol=1e-4), "Pallas output mismatch vs reference"

    print("KERNEL_OK")
</pallas_src>

<mosaic_0001>
module attributes {stable_mosaic.version = 11 : i64} {
  func.func @_fused_matmul_kernel(%arg0: i32, %arg1: memref<32x10xf32, #tpu.memory_space<vmem>>, %arg2: memref<10x128xf32, #tpu.memory_space<vmem>>, %arg3: memref<32x128xf32, #tpu.memory_space<vmem>>) attributes {dimension_semantics = [#tpu.dimension_semantics<parallel>], iteration_bounds = array<i64: 1>, scalar_prefetch = 0 : i64, scratch_operands = 0 : i64, tpu.core_type = #tpu.core_type<tc>, window_params = [{transform_indices = @transform_0, window_bounds = array<i64: 32, 10>}, {pipeline_mode = #tpu.pipeline_mode<synchronous>, transform_indices = @transform_1, window_bounds = array<i64: 10, 128>}, {transform_indices = @transform_2, window_bounds = array<i64: 32, 128>}]} {
    %c0 = arith.constant 0 : index
    %c0_0 = arith.constant 0 : index
    %0 = vector.load %arg1[%c0, %c0_0] : memref<32x10xf32, #tpu.memory_space<vmem>>, vector<32x10xf32>
    %c0_1 = arith.constant 0 : index
    %c0_2 = arith.constant 0 : index
    %1 = vector.load %arg2[%c0_1, %c0_2] : memref<10x128xf32, #tpu.memory_space<vmem>>, vector<10x128xf32>
    %cst = arith.constant dense<0.000000e+00> : vector<32x128xf32>
    %2 = tpu.matmul %0, %1, %cst {dimension_numbers = #tpu.dot_dimension_numbers<[1], [0], [0], [1], [0, 0, 1, 1], [], []>} : vector<32x10xf32>, vector<10x128xf32>, vector<32x128xf32> -> vector<32x128xf32>
    %c0_3 = arith.constant 0 : index
    %c0_4 = arith.constant 0 : index
    %3 = vector.load %arg3[%c0_3, %c0_4] : memref<32x128xf32, #tpu.memory_space<vmem>>, vector<32x128xf32>
    tpu.vector_store %arg3[%c0_3, %c0_4], %2 {strides = array<i32>} : memref<32x128xf32, #tpu.memory_space<vmem>>, vector<32x128xf32>,
    return
  }
  func.func @transform_0(%arg0: i32) -> (i32, i32) {
    %c0_i32 = arith.constant 0 : i32
    %c0_i32_0 = arith.constant 0 : i32
    return %arg0, %c0_i32 : i32, i32
  }
  func.func @transform_1(%arg0: i32) -> (i32, i32) {
    %c0_i32 = arith.constant 0 : i32
    %c0_i32_0 = arith.constant 0 : i32
    %c0_i32_1 = arith.constant 0 : i32
    return %c0_i32, %c0_i32_0 : i32, i32
  }
  func.func @transform_2(%arg0: i32) -> (i32, i32) {
    %c0_i32 = arith.constant 0 : i32
    %c0_i32_0 = arith.constant 0 : i32
    return %arg0, %c0_i32 : i32, i32
  }
}

</mosaic_0001>

<llo_original>
// kernel: tpu_custom_call.1
$region0: #{tpu_custom_call.1}
  #allocation0 [shape = 'u32[]', space=smem, size = 0x4, offset = 0x4, fixed_abs, tag = 'smem constant byte address 0x4 - core index']
  #allocation1 [shape = 'u32[144,128]{1,0:T(1,128)}', space=vmem, size = 0x12000, scoped, tag = 'internal scratch']
  %s0 = inlined_call_operand.vmem [shape: f32[32,10], index: 0, kind: input, shape index: {}]
  %s1 = inlined_call_operand.vmem [shape: f32[10,128], index: 1, kind: input, shape index: {}]
  %s2 = inlined_call_operand.hbm [shape: f32[32,128], index: 2, kind: output, shape index: {}]
  %s3 = sld [smem:[#allocation0]]
  $region18: #{tpu_custom_call.1} parent=0
    _
  %s5 = ssub.s32 1, %s3
  %s6 = scalar_select 0, %s5, %s3
  $region1: #{tpu_custom_call.1} parent=0
    #allocation2 [shape = 'u8[16384]{0}', space=vmem, size = 0x4000, scoped, tag = 'output window, operand 0, single buffered']
    #allocation3 [shape = 's32[1]{0}', space=sflag, size = 0x4, scoped, tag = 'scoped memory for tpu_custom_call.1']
    %7 = vsyncpa [#allocation3], 0
    // Predicated region
    $region2: #{tpu_custom_call.1} parent=1 // pred_check
      _
    $region3: #{tpu_custom_call.1} parent=1 // pred_check_branch
      %9 = sbr.rel (0) target = $region5
    $region4: #{tpu_custom_call.1} parent=1 // pred_region
      _
    $region5: #{tpu_custom_call.1} parent=1 // pred_fallthru
      _
    // Predicated region
    $region6: #{tpu_custom_call.1} parent=1 // pred_check
      _
    $region7: #{tpu_custom_call.1} parent=1 // pred_check_branch
      %11 = sbr.rel (0) target = $region9
    $region8: #{tpu_custom_call.1} parent=1 // pred_region
      _
    $region9: #{tpu_custom_call.1} parent=1 // pred_fallthru
      _
    %v12 = vld [vmem:[%s0] sm:$0xff]
    %v13 = vld [vmem:[%s0 + $0x8] sm:$0xff]
    %v14 = vld [vmem:[%s0 + $0x10] sm:$0xff]
    %v15 = vld [vmem:[%s0 + $0x18] sm:$0xff]
    %v16 = vld [vmem:[%s1] sm:$0xff]
    %v17 = vld [vmem:[%s1 + $0x8] sm:$0x3]
    %vm18 = vcmask 80896
    %v20 = vsel %vm18, %v12, 0
    %v23 = vsel %vm18, %v13, 0
    %v26 = vsel %vm18, %v14, 0
    %v29 = vsel %vm18, %v15, 0
    %vm31 = vcmask 1041408
    %v33 = vsel %vm31, %v17, 0
    %35 = vmatprep.subr.mxu0 0.0
    %36 = vmatpush1.msra.mxu0 %v16
    %37 = vmatprep.subr.mxu0 0.0
    %38 = vmatpush1.msra.mxu0 %v33
    %39 = vmatprep.subr.mxu0 0.0
    %40 = vmatpush1.msra.mxu0 0.0
    %41 = vmatprep.subr.mxu0 0.0
    %42 = vmatpush1.msra.mxu0 0.0
    %43 = vmatprep.subr.mxu0 0.0
    %44 = vmatpush1.msra.mxu0 0.0
    %45 = vmatprep.subr.mxu0 0.0
    %46 = vmatpush1.msra.mxu0 0.0
    %47 = vmatprep.subr.mxu0 0.0
    %48 = vmatpush1.msra.mxu0 0.0
    %49 = vmatprep.subr.mxu0 0.0
    %50 = vmatpush1.msra.mxu0 0.0
    %51 = vmatprep.subr.mxu0 0.0
    %52 = vmatpush1.msra.mxu0 0.0
    %53 = vmatprep.subr.mxu0 0.0
    %54 = vmatpush1.msra.mxu0 0.0
    %55 = vmatprep.subr.mxu0 0.0
    %56 = vmatpush1.msra.mxu0 0.0
    %57 = vmatprep.subr.mxu0 0.0
    %58 = vmatpush1.msra.mxu0 0.0
    %59 = vmatprep.subr.mxu0 0.0
    %60 = vmatpush1.msra.mxu0 0.0
    %61 = vmatprep.subr.mxu0 0.0
    %62 = vmatpush1.msra.mxu0 0.0
    %63 = vmatprep.subr.mxu0 0.0
    %64 = vmatpush1.msra.mxu0 0.0
    %65 = vmatprep.subr.mxu0 0.0
    %66 = vmatpush1.msra.mxu0 0.0
    %67 = vmatprep.subr.mxu0 0.0
    %68 = vmatpush1.msra.mxu0 0.0
    %69 = vmatprep.subr.mxu0 0.0
    %70 = vmatpush1.msra.mxu0 0.0
    %71 = vmatprep.subr.mxu0 0.0
    %72 = vmatpush1.msra.mxu0 0.0
    %73 = vmatprep.subr.mxu0 0.0
    %74 = vmatpush1.msra.mxu0 0.0
    %75 = vmatprep.subr.mxu0 0.0
    %76 = vmatpush1.msra.mxu0 0.0
    %77 = vmatprep.subr.mxu0 0.0
    %78 = vmatpush1.msra.mxu0 0.0
    %79 = vmatprep.subr.mxu0 0.0
    %80 = vmatpush1.msra.mxu0 0.0
    %81 = vmatprep.subr.mxu0 0.0
    %82 = vmatpush1.msra.mxu0 0.0
    %83 = vmatprep.subr.mxu0 0.0
    %84 = vmatpush1.msra.mxu0 0.0
    %85 = vmatprep.subr.mxu0 0.0
    %86 = vmatpush1.msra.mxu0 0.0
    %87 = vmatprep.subr.mxu0 0.0
    %88 = vmatpush1.msra.mxu0 0.0
    %89 = vmatprep.subr.mxu0 0.0
    %90 = vmatpush1.msra.mxu0 0.0
    %91 = vmatprep.subr.mxu0 0.0
    %92 = vmatpush1.msra.mxu0 0.0
    %93 = vmatprep.subr.mxu0 0.0
    %94 = vmatpush1.msra.mxu0 0.0
    %95 = vmatprep.subr.mxu0 0.0
    %96 = vmatpush1.msra.mxu0 0.0
    %97 = vmatprep.subr.mxu0 0.0
    %98 = vmatpush1.msra.mxu0 0.0
    %99 = vmatprep.mubr.f32.mxu0 0.0
    %100 = vmatmul.mubr.f32.gmra.mrb[0].mxu0 %v20
    %v101 = vpop.f32.mrb[0].mxu0
    %v102 = vadd.f32 0.0, %v101
    %v103 = vpop.f32.mrb[0].mxu0
    %104 = vmatprep.mubr.f32.mxu0 0.0
    %105 = vmatmul.mubr.f32.gmra.mrb[0].mxu0 %v23
    %v106 = vpop.f32.mrb[0].mxu0
    %v107 = vadd.f32 0.0, %v106
    %v108 = vpop.f32.mrb[0].mxu0
    %109 = vmatprep.mubr.f32.mxu0 0.0
    %110 = vmatmul.mubr.f32.gmra.mrb[0].mxu0 %v26
    %v111 = vpop.f32.mrb[0].mxu0
    %v112 = vadd.f32 0.0, %v111
    %v113 = vpop.f32.mrb[0].mxu0
    %114 = vmatprep.mubr.f32.mxu0 0.0
    %115 = vmatmul.mubr.f32.gmra.mrb[0].mxu0 %v29
    %v116 = vpop.f32.mrb[0].mxu0
    %v117 = vadd.f32 0.0, %v116
    %v118 = vpop.f32.mrb[0].mxu0
    %119 = vdwg.mxu0
    %120 = vst [vmem:[#allocation2] sm:$0xff] %v102
    %121 = vst [vmem:[#allocation2 + $0x8] sm:$0xff] %v107
    %122 = vst [vmem:[#allocation2 + $0x10] sm:$0xff] %v112
    %123 = vst [vmem:[#allocation2 + $0x18] sm:$0xff] %v117
    // Predicated region
    $region10: #{tpu_custom_call.1} parent=1 // pred_check
      _
    $region11: #{tpu_custom_call.1} parent=1 // pred_check_branch
      %125 = sbr.rel (0) target = $region13
    $region12: #{tpu_custom_call.1} parent=1 // pred_region
      %s127 = ssub.s32 512, 512
      %128 = vsyncadd [#allocation3], %s127
      %s129 = sshll.u32 [#allocation2], 4
      %s130 = int_to_ptr.vmem [resolvable:$true] %s129
      %135 = dma.vmem_to_hbm [thread:$0]  %s130, 512, %s2, [#allocation3], 128, 128, 8
    $region13: #{tpu_custom_call.1} parent=1 // pred_fallthru
      _
    // Predicated region
    $region14: #{tpu_custom_call.1} parent=1 // pred_check
      _
    $region15: #{tpu_custom_call.1} parent=1 // pred_check_branch
      %137 = sbr.rel (0) target = $region17
    $region16: #{tpu_custom_call.1} parent=1 // pred_region
      %138 = dma.done [#allocation3], 512
    $region17: #{tpu_custom_call.1} parent=1 // pred_fallthru
      _
    %139 = vsyncpa [#allocation3], 1

</llo_original>
